<compile_context>
chip_gen: v6e
topology: v6e:2x2x1
jax: 0.10.0
libtpu: 0.0.40
codegen_flags: <defaults>
</compile_context>

<pallas_src>
import jax
import jax.numpy as jnp
from jax import lax
from jax.experimental import pallas as pl
from jax.experimental.pallas import tpu as pltpu


def mlp_l_kernel(wT_ref, x_ref, b_ref, o_ref):
    # Linear with batch on the 128-lane axis: contract n_mlp (dim 1 of BOTH
    # operands):  wT (n_out, n_mlp) x x (tb, n_mlp) -> (n_out, tb).
    # x is read in its native row-major layout (no wrapper transpose).
    z = lax.dot_general(
        wT_ref[...], x_ref[...],
        dimension_numbers=(((1,), (1,)), ((), ())),
        preferred_element_type=jnp.float32,
    )
    z = z + b_ref[...]                       # (n_out, 1) broadcasts over lanes
    # LeakyReLU (PyTorch default negative_slope = 0.01)
    a = jnp.where(z >= 0, z, 0.01 * z)
    # Softmax over the class axis (PyTorch dim=1 == axis 0 here, sublane axis)
    m = jnp.max(a, axis=0, keepdims=True)
    e = jnp.exp(a - m)
    s = jnp.sum(e, axis=0, keepdims=True)
    # EUP reciprocal + one Newton step -> ~f32-exact, no VPU divide
    inv = pl.reciprocal(s, approx=True)
    inv = inv * (2.0 - s * inv)
    o_ref[...] = (e * inv).astype(o_ref.dtype)


def _round_up(x, m):
    return ((x + m - 1) // m) * m


def mlp_l_forward(x, w, b, *, tile_b=16384):
    """x: (batch, n_mlp), w: (n_mlp, n_out), b: (n_out,) -> softmax probs (batch, n_out)."""
    batch, n_mlp = x.shape
    n_out = w.shape[1]

    wT = w.T                       # (n_out, n_mlp) -- tiny, resident in VMEM
    b2 = b.reshape(n_out, 1)       # (n_out, 1)     -- resident, broadcasts over lanes

    # Pad the batch only to the 128-lane quantum (decoupled from tile size).
    padded = _round_up(batch, 128)
    if padded != batch:
        x = jnp.pad(x, ((0, padded - batch), (0, 0)))

    # Pick the batch tile: as large as requested, but capped so the grid keeps
    # >= ~4 steps when possible (v7x megacore sharding + DMA/compute overlap).
    tb = min(_round_up(tile_b, 128), padded)
    if padded > 4 * 128:
        tb = min(tb, _round_up(pl.cdiv(padded, 4), 128))
    tb = max(tb, 128)

    grid = (pl.cdiv(padded, tb),)   # partial last tile is fine (masked writes)

    outT = pl.pallas_call(
        mlp_l_kernel,
        out_shape=jax.ShapeDtypeStruct((n_out, padded), x.dtype),
        grid_spec=pltpu.PrefetchScalarGridSpec(
            num_scalar_prefetch=0,
            grid=grid,
            in_specs=[
                pl.BlockSpec((n_out, n_mlp), lambda i: (0, 0)),  # W^T resident
                pl.BlockSpec((tb, n_mlp), lambda i: (i, 0)),     # x native layout, batch-tiled
                pl.BlockSpec((n_out, 1), lambda i: (0, 0)),      # bias resident
            ],
            out_specs=pl.BlockSpec((n_out, tb), lambda i: (0, i)),  # lane-dense store
        ),
        compiler_params=pltpu.CompilerParams(
            # Batch axis is embarrassingly parallel: lets v7x shard grid steps
            # across its 2 TensorCores; neutral on v5e/v6e (single TC).
            dimension_semantics=("parallel",),
            # Enough for tile sweeps up to ~32K lanes; < 64 MiB v7x physical VMEM.
            vmem_limit_bytes=48 * 1024 * 1024,
        ),
    )(wT, x, b2)

    # Drop padding, return in the PyTorch (batch, n_out) layout.
    # (If the consumer can take (n_out, batch), drop this .T to save a pass.)
    return outT[:, :batch].T


if __name__ == "__main__":
    key = jax.random.PRNGKey(0)
    k_x, k_w, k_b, k_x2, k_x3 = jax.random.split(key, 5)

    n_mlp = 32   # MLP_L(n_mlp)
    n_out = 5    # Linear(n_mlp, 5)

    # Deterministic init mimicking nn.Linear default (uniform +/- 1/sqrt(fan_in))
    bound = 1.0 / (n_mlp ** 0.5)
    w = jax.random.uniform(k_w, (n_mlp, n_out), jnp.float32, -bound, bound)
    b = jax.random.uniform(k_b, (n_out,), jnp.float32, -bound, bound)

    def ref_forward(x):
        z = x @ w + b
        a = jnp.where(z >= 0, z, 0.01 * z)
        return jax.nn.softmax(a, axis=1)

    # Small batch (pads to one 128-lane tile, grid = 1)
    x_small = jax.random.normal(k_x, (8, n_mlp), jnp.float32)
    out_small = jax.block_until_ready(mlp_l_forward(x_small, w, b))
    assert jnp.allclose(out_small, ref_forward(x_small), atol=1e-5, rtol=1e-5), \
        "mismatch vs reference (small batch)"

    # Batch that tiles exactly across a multi-step grid (1024 -> tb=256, grid=4)
    x_mid = jax.random.normal(k_x2, (1024, n_mlp), jnp.float32)
    out_mid = jax.block_until_ready(mlp_l_forward(x_mid, w, b))
    assert jnp.allclose(out_mid, ref_forward(x_mid), atol=1e-5, rtol=1e-5), \
        "mismatch vs reference (tiled batch)"

    # Batch that exercises 128-pad + a partial last tile (1200 -> padded 1280,
    # tb=384, grid=4 with a masked final block)
    x_big = jax.random.normal(k_x3, (1200, n_mlp), jnp.float32)
    out_big = jax.block_until_ready(mlp_l_forward(x_big, w, b))
    assert jnp.allclose(out_big, ref_forward(x_big), atol=1e-5, rtol=1e-5), \
        "mismatch vs reference (padded / partial-tile batch)"

    print("KERNEL_OK")
</pallas_src>

<mosaic_0001>
module attributes {stable_mosaic.version = 11 : i64} {
  func.func @mlp_l_kernel(%arg0: i32, %arg1: memref<5x32xf32, #tpu.memory_space<vmem>>, %arg2: memref<128x32xf32, #tpu.memory_space<vmem>>, %arg3: memref<5x1xf32, #tpu.memory_space<vmem>>, %arg4: memref<5x128xf32, #tpu.memory_space<vmem>>) attributes {dimension_semantics = [#tpu.dimension_semantics<parallel>], iteration_bounds = array<i64: 1>, scalar_prefetch = 0 : i64, scratch_operands = 0 : i64, tpu.core_type = #tpu.core_type<tc>, window_params = [{pipeline_mode = #tpu.pipeline_mode<synchronous>, transform_indices = @transform_0, window_bounds = array<i64: 5, 32>}, {transform_indices = @transform_1, window_bounds = array<i64: 128, 32>}, {pipeline_mode = #tpu.pipeline_mode<synchronous>, transform_indices = @transform_2, window_bounds = array<i64: 5, 1>}, {transform_indices = @transform_3, window_bounds = array<i64: 5, 128>}]} {
    %c0 = arith.constant 0 : index
    %c0_0 = arith.constant 0 : index
    %0 = vector.load %arg1[%c0, %c0_0] : memref<5x32xf32, #tpu.memory_space<vmem>>, vector<5x32xf32>
    %c0_1 = arith.constant 0 : index
    %c0_2 = arith.constant 0 : index
    %1 = vector.load %arg2[%c0_1, %c0_2] : memref<128x32xf32, #tpu.memory_space<vmem>>, vector<128x32xf32>
    %cst = arith.constant dense<0.000000e+00> : vector<5x128xf32>
    %2 = tpu.matmul %0, %1, %cst {dimension_numbers = #tpu.dot_dimension_numbers<[1], [1], [0], [0], [0, 0, 1, 0], [], []>} : vector<5x32xf32>, vector<128x32xf32>, vector<5x128xf32> -> vector<5x128xf32>
    %c0_3 = arith.constant 0 : index
    %c0_4 = arith.constant 0 : index
    %3 = vector.load %arg3[%c0_3, %c0_4] : memref<5x1xf32, #tpu.memory_space<vmem>>, vector<5x1xf32>
    %4 = vector.broadcast %3 : vector<5x1xf32> to vector<5x128xf32>
    %5 = arith.addf %2, %4 : vector<5x128xf32>
    %cst_5 = arith.constant 0.000000e+00 : f32
    %6 = vector.broadcast %cst_5 : f32 to vector<5x128xf32>
    %7 = arith.cmpf oge, %5, %6 : vector<5x128xf32>
    %cst_6 = arith.constant 0.00999999977 : f32
    %8 = vector.broadcast %cst_6 : f32 to vector<5x128xf32>
    %9 = arith.mulf %8, %5 : vector<5x128xf32>
    %10 = arith.select %7, %5, %9 : vector<5x128xi1>, vector<5x128xf32>
    %cst_7 = arith.constant dense<0xFF800000> : vector<128xf32>
    %11 = vector.multi_reduction <maximumf>, %10, %cst_7 [0] : vector<5x128xf32> to vector<128xf32>
    %12 = vector.shape_cast %11 : vector<128xf32> to vector<1x128xf32>
    %13 = vector.broadcast %12 : vector<1x128xf32> to vector<5x128xf32>
    %14 = arith.subf %10, %13 : vector<5x128xf32>
    %15 = math.exp %14 : vector<5x128xf32>
    %cst_8 = arith.constant dense<0.000000e+00> : vector<128xf32>
    %16 = vector.multi_reduction <add>, %15, %cst_8 [0] : vector<5x128xf32> to vector<128xf32>
    %17 = vector.shape_cast %16 : vector<128xf32> to vector<1x128xf32>
    %18 = tpu.reciprocal %17 {approx = true} : vector<1x128xf32> -> vector<1x128xf32>
    %19 = arith.mulf %17, %18 : vector<1x128xf32>
    %cst_9 = arith.constant 2.000000e+00 : f32
    %20 = vector.broadcast %cst_9 : f32 to vector<1x128xf32>
    %21 = arith.subf %20, %19 : vector<1x128xf32>
    %22 = arith.mulf %18, %21 : vector<1x128xf32>
    %23 = vector.broadcast %22 : vector<1x128xf32> to vector<5x128xf32>
    %24 = arith.mulf %15, %23 : vector<5x128xf32>
    %c0_10 = arith.constant 0 : index
    %c0_11 = arith.constant 0 : index
    %25 = vector.load %arg4[%c0_10, %c0_11] : memref<5x128xf32, #tpu.memory_space<vmem>>, vector<5x128xf32>
    tpu.vector_store %arg4[%c0_10, %c0_11], %24 {strides = array<i32>} : memref<5x128xf32, #tpu.memory_space<vmem>>, vector<5x128xf32>,
    return
  }
  func.func @transform_0(%arg0: i32) -> (i32, i32) {
    %c0_i32 = arith.constant 0 : i32
    %c0_i32_0 = arith.constant 0 : i32
    %c0_i32_1 = arith.constant 0 : i32
    return %c0_i32, %c0_i32_0 : i32, i32
  }
  func.func @transform_1(%arg0: i32) -> (i32, i32) {
    %c0_i32 = arith.constant 0 : i32
    %c0_i32_0 = arith.constant 0 : i32
    return %arg0, %c0_i32 : i32, i32
  }
  func.func @transform_2(%arg0: i32) -> (i32, i32) {
    %c0_i32 = arith.constant 0 : i32
    %c0_i32_0 = arith.constant 0 : i32
    %c0_i32_1 = arith.constant 0 : i32
    return %c0_i32, %c0_i32_0 : i32, i32
  }
  func.func @transform_3(%arg0: i32) -> (i32, i32) {
    %c0_i32 = arith.constant 0 : i32
    %c0_i32_0 = arith.constant 0 : i32
    return %c0_i32, %arg0 : i32, i32
  }
}

</mosaic_0001>

<llo_original>
// kernel: tpu_custom_call.1
$region0: #{tpu_custom_call.1}
  #allocation0 [shape = 'u32[]', space=smem, size = 0x4, offset = 0x4, fixed_abs, tag = 'smem constant byte address 0x4 - core index']
  #allocation1 [shape = 'u32[144,128]{1,0:T(1,128)}', space=vmem, size = 0x12000, scoped, tag = 'internal scratch']
  %s0 = inlined_call_operand.vmem [shape: f32[5,32], index: 0, kind: input, shape index: {}]
  %s1 = inlined_call_operand.vmem [shape: f32[128,32], index: 1, kind: input, shape index: {}]
  %s2 = inlined_call_operand.vmem [shape: f32[5,1], index: 2, kind: input, shape index: {}]
  %s3 = inlined_call_operand.hbm [shape: f32[5,128], index: 3, kind: output, shape index: {}]
  %s4 = sld [smem:[#allocation0]]
  $region22: #{tpu_custom_call.1} parent=0
    _
  %s6 = ssub.s32 1, %s4
  %s7 = scalar_select 0, %s6, %s4
  $region1: #{tpu_custom_call.1} parent=0
    #allocation2 [shape = 'u8[4096]{0}', space=vmem, size = 0x1000, scoped, tag = 'output window, operand 0, single buffered']
    #allocation3 [shape = 's32[1]{0}', space=sflag, size = 0x4, scoped, tag = 'scoped memory for tpu_custom_call.1']
    %8 = vsyncpa [#allocation3], 0
    // Predicated region
    $region2: #{tpu_custom_call.1} parent=1 // pred_check
      _
    $region3: #{tpu_custom_call.1} parent=1 // pred_check_branch
      %10 = sbr.rel (0) target = $region5
    $region4: #{tpu_custom_call.1} parent=1 // pred_region
      _
    $region5: #{tpu_custom_call.1} parent=1 // pred_fallthru
      _
    // Predicated region
    $region6: #{tpu_custom_call.1} parent=1 // pred_check
      _
    $region7: #{tpu_custom_call.1} parent=1 // pred_check_branch
      %12 = sbr.rel (0) target = $region9
    $region8: #{tpu_custom_call.1} parent=1 // pred_region
      _
    $region9: #{tpu_custom_call.1} parent=1 // pred_fallthru
      _
    // Predicated region
    $region10: #{tpu_custom_call.1} parent=1 // pred_check
      _
    $region11: #{tpu_custom_call.1} parent=1 // pred_check_branch
      %14 = sbr.rel (0) target = $region13
    $region12: #{tpu_custom_call.1} parent=1 // pred_region
      _
    $region13: #{tpu_custom_call.1} parent=1 // pred_fallthru
      _
    %v15 = vld [vmem:[%s0] sm:$0x1f]
    %v16 = vld [vmem:[%s1] sm:$0xff]
    %v17 = vld [vmem:[%s1 + $0x8] sm:$0xff]
    %v18 = vld [vmem:[%s1 + $0x10] sm:$0xff]
    %v19 = vld [vmem:[%s1 + $0x18] sm:$0xff]
    %v20 = vld [vmem:[%s1 + $0x20] sm:$0xff]
    %v21 = vld [vmem:[%s1 + $0x28] sm:$0xff]
    %v22 = vld [vmem:[%s1 + $0x30] sm:$0xff]
    %v23 = vld [vmem:[%s1 + $0x38] sm:$0xff]
    %v24 = vld [vmem:[%s1 + $0x40] sm:$0xff]
    %v25 = vld [vmem:[%s1 + $0x48] sm:$0xff]
    %v26 = vld [vmem:[%s1 + $0x50] sm:$0xff]
    %v27 = vld [vmem:[%s1 + $0x58] sm:$0xff]
    %v28 = vld [vmem:[%s1 + $0x60] sm:$0xff]
    %v29 = vld [vmem:[%s1 + $0x68] sm:$0xff]
    %v30 = vld [vmem:[%s1 + $0x70] sm:$0xff]
    %v31 = vld [vmem:[%s1 + $0x78] sm:$0xff]
    %v32 = vld [vmem:[%s2] sm:$0x1f]
    %34 = vset.pattern.permute.xlu0 0
    %35 = vperm.xlu0 %34, %v32
    %v36 = vpop.permute.xlu0 %35
    %vm38 = vcmask 261120
    %v40 = vsel %vm38, %v15, 0
    %v43 = vsel %vm38, %v16, 0
    %v46 = vsel %vm38, %v17, 0
    %v49 = vsel %vm38, %v18, 0
    %v52 = vsel %vm38, %v19, 0
    %v55 = vsel %vm38, %v20, 0
    %v58 = vsel %vm38, %v21, 0
    %v61 = vsel %vm38, %v22, 0
    %v64 = vsel %vm38, %v23, 0
    %v67 = vsel %vm38, %v24, 0
    %v70 = vsel %vm38, %v25, 0
    %v73 = vsel %vm38, %v26, 0
    %v76 = vsel %vm38, %v27, 0
    %v79 = vsel %vm38, %v28, 0
    %v82 = vsel %vm38, %v29, 0
    %v85 = vsel %vm38, %v30, 0
    %v88 = vsel %vm38, %v31, 0
    %90 = vmatprep.subr.mxu0 0.0
    %91 = vmatpush1.xpose.msra.mxu0 %v88
    %92 = vmatprep.subr.mxu0 0.0
    %93 = vmatpush1.xpose.msra.mxu0 %v85
    %94 = vmatprep.subr.mxu0 0.0
    %95 = vmatpush1.xpose.msra.mxu0 %v82
    %96 = vmatprep.subr.mxu0 0.0
    %97 = vmatpush1.xpose.msra.mxu0 %v79
    %98 = vmatprep.subr.mxu0 0.0
    %99 = vmatpush1.xpose.msra.mxu0 %v76
    %100 = vmatprep.subr.mxu0 0.0
    %101 = vmatpush1.xpose.msra.mxu0 %v73
    %102 = vmatprep.subr.mxu0 0.0
    %103 = vmatpush1.xpose.msra.mxu0 %v70
    %104 = vmatprep.subr.mxu0 0.0
    %105 = vmatpush1.xpose.msra.mxu0 %v67
    %106 = vmatprep.subr.mxu0 0.0
    %107 = vmatpush1.xpose.msra.mxu0 %v64
    %108 = vmatprep.subr.mxu0 0.0
    %109 = vmatpush1.xpose.msra.mxu0 %v61
    %110 = vmatprep.subr.mxu0 0.0
    %111 = vmatpush1.xpose.msra.mxu0 %v58
    %112 = vmatprep.subr.mxu0 0.0
    %113 = vmatpush1.xpose.msra.mxu0 %v55
    %114 = vmatprep.subr.mxu0 0.0
    %115 = vmatpush1.xpose.msra.mxu0 %v52
    %116 = vmatprep.subr.mxu0 0.0
    %117 = vmatpush1.xpose.msra.mxu0 %v49
    %118 = vmatprep.subr.mxu0 0.0
    %119 = vmatpush1.xpose.msra.mxu0 %v46
    %120 = vmatprep.subr.mxu0 0.0
    %121 = vmatpush1.xpose.msra.mxu0 %v43
    %122 = vmatprep.subr.mxu0 0.0
    %123 = vmatpush2.xpose.msra.mxu0 0.0
    %124 = vmatprep.subr.mxu0 0.0
    %125 = vmatpush2.xpose.msra.mxu0 0.0
    %126 = vmatprep.subr.mxu0 0.0
    %127 = vmatpush2.xpose.msra.mxu0 0.0
    %128 = vmatprep.subr.mxu0 0.0
    %129 = vmatpush2.xpose.msra.mxu0 0.0
    %130 = vmatprep.subr.mxu0 0.0
    %131 = vmatpush2.xpose.msra.mxu0 0.0
    %132 = vmatprep.subr.mxu0 0.0
    %133 = vmatpush2.xpose.msra.mxu0 0.0
    %134 = vmatprep.subr.mxu0 0.0
    %135 = vmatpush2.xpose.msra.mxu0 0.0
    %136 = vmatprep.subr.mxu0 0.0
    %137 = vmatpush2.xpose.msra.mxu0 0.0
    %138 = vmatprep.subr.mxu0 0.0
    %139 = vmatpush2.xpose.msra.mxu0 0.0
    %140 = vmatprep.subr.mxu0 0.0
    %141 = vmatpush2.xpose.msra.mxu0 0.0
    %142 = vmatprep.subr.mxu0 0.0
    %143 = vmatpush2.xpose.msra.mxu0 0.0
    %144 = vmatprep.subr.mxu0 0.0
    %145 = vmatpush2.xpose.msra.mxu0 0.0
    %146 = vmatprep.subr.mxu0 0.0
    %147 = vmatpush2.xpose.msra.mxu0 0.0
    %148 = vmatprep.subr.mxu0 0.0
    %149 = vmatpush2.xpose.msra.mxu0 0.0
    %150 = vmatprep.subr.mxu0 0.0
    %151 = vmatpush2.xpose.msra.mxu0 0.0
    %152 = vmatprep.subr.mxu0 0.0
    %153 = vmatpush2.xpose.msra.mxu0 0.0
    %154 = vmatprep.mubr.f32.mxu0 0.0
    %155 = vmatmul.mubr.f32.gmra.mxu0 %v40
    %v156 = vpop.f32.mrf.mxu0
    %v157 = vadd.f32 %v36, %v156
    %v158 = vpop.f32.mrf.mxu0
    %159 = vdwg.mxu0
    %vm160 = vcmp.ge.f32.partialorder %v157, 0.0
    %v161 = vmul.f32 %v157, 0.01
    %v162 = vsel %vm160, %v157, %v161
    %vm163 = vcmask 1044480
    %v164 = vsel %vm163, %v162, -inf
    %v165 = vrot.slane %v164, 4
    %v166 = vmax.f32 %v164, %v165
    %v167 = vrot.slane %v166, 2
    %v168 = vmax.f32 %v166, %v167
    %v169 = vrot.slane %v168, 1
    %v170 = vmax.f32 %v168, %v169
    %v171 = vsub.f32 %v162, %v170
    %v172 = vmul.f32 %v171, 1.442695
    %v173 = vpow.pop %v172
    %v174 = vsel %vm163, %v173, 0.0
    %v175 = vrot.slane %v174, 4
    %v176 = vadd.f32 %v174, %v175
    %v177 = vrot.slane %v176, 2
    %v178 = vadd.f32 %v176, %v177
    %v179 = vrot.slane %v178, 1
    %v180 = vadd.f32 %v178, %v179
    %v181 = vrcp.pop %v180
    %v182 = vmul.f32 %v180, %v181
    %v183 = vsub.f32 2.0, %v182
    %v184 = vmul.f32 %v181, %v183
    %v185 = vmul.f32 %v173, %v184
    %186 = vst [vmem:[#allocation2] sm:$0x1f] %v185
    // Predicated region
    $region14: #{tpu_custom_call.1} parent=1 // pred_check
      _
    $region15: #{tpu_custom_call.1} parent=1 // pred_check_branch
      %188 = sbr.rel (0) target = $region17
    $region16: #{tpu_custom_call.1} parent=1 // pred_region
      %s190 = ssub.s32 128, 128
      %191 = vsyncadd [#allocation3], %s190
      %s193 = sshll.u32 [#allocation2], 4
      %s194 = int_to_ptr.vmem [resolvable:$true] %s193
      %196 = dma.vmem_to_hbm [thread:$0]  %s194, 128, %s3, [#allocation3]
    $region17: #{tpu_custom_call.1} parent=1 // pred_fallthru
      _
    // Predicated region
    $region18: #{tpu_custom_call.1} parent=1 // pred_check
      _
    $region19: #{tpu_custom_call.1} parent=1 // pred_check_branch
      %198 = sbr.rel (0) target = $region21
    $region20: #{tpu_custom_call.1} parent=1 // pred_region
      %199 = dma.done [#allocation3], 128
    $region21: #{tpu_custom_call.1} parent=1 // pred_fallthru
      _
    %200 = vsyncpa [#allocation3], 1

</llo_original>
